<compile_context>
chip_gen: v5e
topology: v5e:2x2
jax: 0.10.0
libtpu: 0.0.40
codegen_flags: <defaults>
</compile_context>

<pallas_src>
import jax
import jax.numpy as jnp
from jax.experimental import pallas as pl
from jax.experimental.pallas import tpu as pltpu


def mlp_kernel(x_ref, w1_ref, b1_ref, w2_ref, b2_ref, w3_ref, b3_ref,
               w4_ref, b4_ref, out_ref):
    cdt = w1_ref.dtype  # compute dtype for MXU operands (bf16 or f32)

    # linear1 + relu      (h: [32, bm])
    h = jnp.dot(w1_ref[...], x_ref[...], preferred_element_type=jnp.float32)
    h = jnp.maximum(h + b1_ref[...], 0.0).astype(cdt)
    # linear2 + relu      (h: [32, bm])
    h = jnp.dot(w2_ref[...], h, preferred_element_type=jnp.float32)
    h = jnp.maximum(h + b2_ref[...], 0.0).astype(cdt)
    # linear3 + relu      (h: [16, bm])
    h = jnp.dot(w3_ref[...], h, preferred_element_type=jnp.float32)
    h = jnp.maximum(h + b3_ref[...], 0.0).astype(cdt)
    # linear4 (no activation)   (h: [out_dim, bm])
    h = jnp.dot(w4_ref[...], h, preferred_element_type=jnp.float32)
    out_ref[...] = (h + b4_ref[...]).astype(out_ref.dtype)


def mlp_forward(x, params, *, bm=512, use_bf16=True):
    """x: [B, input_dim] float32. params: w1..w4 [out,in], b1..b4 [out,1].

    Returns [B, output_dim] float32 (same semantics as the PyTorch module).
    """
    B, input_dim = x.shape
    output_dim = params["w4"].shape[0]

    compute_dtype = jnp.bfloat16 if use_bf16 else jnp.float32

    # Batch on the lane axis: activations become [features, batch].
    xt = x.T.astype(compute_dtype)                       # [input_dim, B]

    # Lane tile: multiple of 128; cap at the (128-rounded) batch so small
    # batches collapse to a single grid step instead of a hard divisibility assert.
    padded_b_min = ((B + 127) // 128) * 128
    bm = max(128, min(bm, padded_b_min))
    n_steps = pl.cdiv(B, bm)
    padded_B = n_steps * bm
    if padded_B != B:
        xt = jnp.pad(xt, ((0, 0), (0, padded_B - B)))

    ws = [params[f"w{i}"].astype(compute_dtype) for i in range(1, 5)]
    bs = [params[f"b{i}"].astype(jnp.float32) for i in range(1, 5)]

    def full_spec(arr):
        # weights / biases: one block equal to the full array, constant index_map
        return pl.BlockSpec(arr.shape, lambda i: (0,) * arr.ndim)

    in_specs = [pl.BlockSpec((input_dim, bm), lambda i: (0, i))]   # x tiled over lanes
    for w, b in zip(ws, bs):
        in_specs += [full_spec(w), full_spec(b)]

    out_spec = pl.BlockSpec((output_dim, bm), lambda i: (0, i))    # lane-dense output

    out_t = pl.pallas_call(
        mlp_kernel,
        out_shape=jax.ShapeDtypeStruct((output_dim, padded_B), jnp.float32),
        grid_spec=pltpu.PrefetchScalarGridSpec(
            num_scalar_prefetch=0,
            grid=(n_steps,),
            in_specs=in_specs,
            out_specs=out_spec,
        ),
        compiler_params=pltpu.CompilerParams(
            dimension_semantics=("parallel",)),   # >=2 steps feed both v7x TCs at large B
    )(xt, ws[0], bs[0], ws[1], bs[1], ws[2], bs[2], ws[3], bs[3])

    return out_t[:, :B].T                                # back to [B, output_dim]


def init_params(key, input_dim, output_dim):
    """Deterministic init mirroring nn.Linear: weight [out, in], bias kept as [out, 1]."""
    dims = [(input_dim, 32), (32, 32), (32, 16), (16, output_dim)]
    params = {}
    for idx, (din, dout) in enumerate(dims, start=1):
        key, kw, kb = jax.random.split(key, 3)
        bound = 1.0 / jnp.sqrt(din)
        params[f"w{idx}"] = jax.random.uniform(
            kw, (dout, din), jnp.float32, -bound, bound)
        params[f"b{idx}"] = jax.random.uniform(
            kb, (dout, 1), jnp.float32, -bound, bound)
    return params


def reference_forward(x, params):
    h = x
    for i in range(1, 5):
        h = h @ params[f"w{i}"].T + params[f"b{i}"].T
        if i < 4:
            h = jnp.maximum(h, 0.0)
    return h


if __name__ == "__main__":
    key = jax.random.PRNGKey(0)
    batch, input_dim, output_dim = 64, 16, 4

    kx, kp = jax.random.split(key)
    x = jax.random.normal(kx, (batch, input_dim), jnp.float32)
    params = init_params(kp, input_dim, output_dim)

    ref = reference_forward(x, params)

    # fp32 path: exact-correctness check of the kernel layout/plumbing
    out_f32 = mlp_forward(x, params, use_bf16=False)
    jax.block_until_ready(out_f32)
    assert out_f32.shape == (batch, output_dim)
    assert jnp.allclose(out_f32, ref, atol=1e-5, rtol=1e-5)

    # optimized bf16 path (native MXU operands on v6e/v7x, fp32 accumulation)
    out = mlp_forward(x, params, use_bf16=True)
    jax.block_until_ready(out)
    assert out.shape == (batch, output_dim)
    assert jnp.allclose(out, ref, atol=3e-2, rtol=3e-2)

    print("KERNEL_OK")
</pallas_src>

<mosaic_0001>
module attributes {stable_mosaic.version = 11 : i64} {
  func.func @mlp_kernel(%arg0: i32, %arg1: memref<16x128xf32, #tpu.memory_space<vmem>>, %arg2: memref<32x16xf32, #tpu.memory_space<vmem>>, %arg3: memref<32x1xf32, #tpu.memory_space<vmem>>, %arg4: memref<32x32xf32, #tpu.memory_space<vmem>>, %arg5: memref<32x1xf32, #tpu.memory_space<vmem>>, %arg6: memref<16x32xf32, #tpu.memory_space<vmem>>, %arg7: memref<16x1xf32, #tpu.memory_space<vmem>>, %arg8: memref<4x16xf32, #tpu.memory_space<vmem>>, %arg9: memref<4x1xf32, #tpu.memory_space<vmem>>, %arg10: memref<4x128xf32, #tpu.memory_space<vmem>>) attributes {dimension_semantics = [#tpu.dimension_semantics<parallel>], iteration_bounds = array<i64: 1>, scalar_prefetch = 0 : i64, scratch_operands = 0 : i64, tpu.core_type = #tpu.core_type<tc>, window_params = [{transform_indices = @transform_0, window_bounds = array<i64: 16, 128>}, {pipeline_mode = #tpu.pipeline_mode<synchronous>, transform_indices = @transform_1, window_bounds = array<i64: 32, 16>}, {pipeline_mode = #tpu.pipeline_mode<synchronous>, transform_indices = @transform_2, window_bounds = array<i64: 32, 1>}, {pipeline_mode = #tpu.pipeline_mode<synchronous>, transform_indices = @transform_3, window_bounds = array<i64: 32, 32>}, {pipeline_mode = #tpu.pipeline_mode<synchronous>, transform_indices = @transform_4, window_bounds = array<i64: 32, 1>}, {pipeline_mode = #tpu.pipeline_mode<synchronous>, transform_indices = @transform_5, window_bounds = array<i64: 16, 32>}, {pipeline_mode = #tpu.pipeline_mode<synchronous>, transform_indices = @transform_6, window_bounds = array<i64: 16, 1>}, {pipeline_mode = #tpu.pipeline_mode<synchronous>, transform_indices = @transform_7, window_bounds = array<i64: 4, 16>}, {pipeline_mode = #tpu.pipeline_mode<synchronous>, transform_indices = @transform_8, window_bounds = array<i64: 4, 1>}, {transform_indices = @transform_9, window_bounds = array<i64: 4, 128>}]} {
    %c0 = arith.constant 0 : index
    %c0_0 = arith.constant 0 : index
    %0 = vector.load %arg2[%c0, %c0_0] : memref<32x16xf32, #tpu.memory_space<vmem>>, vector<32x16xf32>
    %c0_1 = arith.constant 0 : index
    %c0_2 = arith.constant 0 : index
    %1 = vector.load %arg1[%c0_1, %c0_2] : memref<16x128xf32, #tpu.memory_space<vmem>>, vector<16x128xf32>
    %cst = arith.constant dense<0.000000e+00> : vector<32x128xf32>
    %2 = tpu.matmul %0, %1, %cst {dimension_numbers = #tpu.dot_dimension_numbers<[1], [0], [0], [1], [0, 0, 1, 1], [], []>} : vector<32x16xf32>, vector<16x128xf32>, vector<32x128xf32> -> vector<32x128xf32>
    %c0_3 = arith.constant 0 : index
    %c0_4 = arith.constant 0 : index
    %3 = vector.load %arg3[%c0_3, %c0_4] : memref<32x1xf32, #tpu.memory_space<vmem>>, vector<32x1xf32>
    %4 = vector.broadcast %3 : vector<32x1xf32> to vector<32x128xf32>
    %5 = arith.addf %2, %4 : vector<32x128xf32>
    %cst_5 = arith.constant 0.000000e+00 : f32
    %6 = vector.broadcast %cst_5 : f32 to vector<32x128xf32>
    %7 = arith.maximumf %5, %6 : vector<32x128xf32>
    %c0_6 = arith.constant 0 : index
    %c0_7 = arith.constant 0 : index
    %8 = vector.load %arg4[%c0_6, %c0_7] : memref<32x32xf32, #tpu.memory_space<vmem>>, vector<32x32xf32>
    %cst_8 = arith.constant dense<0.000000e+00> : vector<32x128xf32>
    %9 = tpu.matmul %8, %7, %cst_8 {dimension_numbers = #tpu.dot_dimension_numbers<[1], [0], [0], [1], [0, 0, 1, 1], [], []>} : vector<32x32xf32>, vector<32x128xf32>, vector<32x128xf32> -> vector<32x128xf32>
    %c0_9 = arith.constant 0 : index
    %c0_10 = arith.constant 0 : index
    %10 = vector.load %arg5[%c0_9, %c0_10] : memref<32x1xf32, #tpu.memory_space<vmem>>, vector<32x1xf32>
    %11 = vector.broadcast %10 : vector<32x1xf32> to vector<32x128xf32>
    %12 = arith.addf %9, %11 : vector<32x128xf32>
    %cst_11 = arith.constant 0.000000e+00 : f32
    %13 = vector.broadcast %cst_11 : f32 to vector<32x128xf32>
    %14 = arith.maximumf %12, %13 : vector<32x128xf32>
    %c0_12 = arith.constant 0 : index
    %c0_13 = arith.constant 0 : index
    %15 = vector.load %arg6[%c0_12, %c0_13] : memref<16x32xf32, #tpu.memory_space<vmem>>, vector<16x32xf32>
    %cst_14 = arith.constant dense<0.000000e+00> : vector<16x128xf32>
    %16 = tpu.matmul %15, %14, %cst_14 {dimension_numbers = #tpu.dot_dimension_numbers<[1], [0], [0], [1], [0, 0, 1, 1], [], []>} : vector<16x32xf32>, vector<32x128xf32>, vector<16x128xf32> -> vector<16x128xf32>
    %c0_15 = arith.constant 0 : index
    %c0_16 = arith.constant 0 : index
    %17 = vector.load %arg7[%c0_15, %c0_16] : memref<16x1xf32, #tpu.memory_space<vmem>>, vector<16x1xf32>
    %18 = vector.broadcast %17 : vector<16x1xf32> to vector<16x128xf32>
    %19 = arith.addf %16, %18 : vector<16x128xf32>
    %cst_17 = arith.constant 0.000000e+00 : f32
    %20 = vector.broadcast %cst_17 : f32 to vector<16x128xf32>
    %21 = arith.maximumf %19, %20 : vector<16x128xf32>
    %c0_18 = arith.constant 0 : index
    %c0_19 = arith.constant 0 : index
    %22 = vector.load %arg8[%c0_18, %c0_19] : memref<4x16xf32, #tpu.memory_space<vmem>>, vector<4x16xf32>
    %cst_20 = arith.constant dense<0.000000e+00> : vector<4x128xf32>
    %23 = tpu.matmul %22, %21, %cst_20 {dimension_numbers = #tpu.dot_dimension_numbers<[1], [0], [0], [1], [0, 0, 1, 1], [], []>} : vector<4x16xf32>, vector<16x128xf32>, vector<4x128xf32> -> vector<4x128xf32>
    %c0_21 = arith.constant 0 : index
    %c0_22 = arith.constant 0 : index
    %24 = vector.load %arg9[%c0_21, %c0_22] : memref<4x1xf32, #tpu.memory_space<vmem>>, vector<4x1xf32>
    %25 = vector.broadcast %24 : vector<4x1xf32> to vector<4x128xf32>
    %26 = arith.addf %23, %25 : vector<4x128xf32>
    %c0_23 = arith.constant 0 : index
    %c0_24 = arith.constant 0 : index
    %27 = vector.load %arg10[%c0_23, %c0_24] : memref<4x128xf32, #tpu.memory_space<vmem>>, vector<4x128xf32>
    tpu.vector_store %arg10[%c0_23, %c0_24], %26 {strides = array<i32>} : memref<4x128xf32, #tpu.memory_space<vmem>>, vector<4x128xf32>,
    return
  }
  func.func @transform_0(%arg0: i32) -> (i32, i32) {
    %c0_i32 = arith.constant 0 : i32
    %c0_i32_0 = arith.constant 0 : i32
    return %c0_i32, %arg0 : i32, i32
  }
  func.func @transform_1(%arg0: i32) -> (i32, i32) {
    %c0_i32 = arith.constant 0 : i32
    %c0_i32_0 = arith.constant 0 : i32
    %c0_i32_1 = arith.constant 0 : i32
    return %c0_i32, %c0_i32_0 : i32, i32
  }
  func.func @transform_2(%arg0: i32) -> (i32, i32) {
    %c0_i32 = arith.constant 0 : i32
    %c0_i32_0 = arith.constant 0 : i32
    %c0_i32_1 = arith.constant 0 : i32
    return %c0_i32, %c0_i32_0 : i32, i32
  }
  func.func @transform_3(%arg0: i32) -> (i32, i32) {
    %c0_i32 = arith.constant 0 : i32
    %c0_i32_0 = arith.constant 0 : i32
    %c0_i32_1 = arith.constant 0 : i32
    return %c0_i32, %c0_i32_0 : i32, i32
  }
  func.func @transform_4(%arg0: i32) -> (i32, i32) {
    %c0_i32 = arith.constant 0 : i32
    %c0_i32_0 = arith.constant 0 : i32
    %c0_i32_1 = arith.constant 0 : i32
    return %c0_i32, %c0_i32_0 : i32, i32
  }
  func.func @transform_5(%arg0: i32) -> (i32, i32) {
    %c0_i32 = arith.constant 0 : i32
    %c0_i32_0 = arith.constant 0 : i32
    %c0_i32_1 = arith.constant 0 : i32
    return %c0_i32, %c0_i32_0 : i32, i32
  }
  func.func @transform_6(%arg0: i32) -> (i32, i32) {
    %c0_i32 = arith.constant 0 : i32
    %c0_i32_0 = arith.constant 0 : i32
    %c0_i32_1 = arith.constant 0 : i32
    return %c0_i32, %c0_i32_0 : i32, i32
  }
  func.func @transform_7(%arg0: i32) -> (i32, i32) {
    %c0_i32 = arith.constant 0 : i32
    %c0_i32_0 = arith.constant 0 : i32
    %c0_i32_1 = arith.constant 0 : i32
    return %c0_i32, %c0_i32_0 : i32, i32
  }
  func.func @transform_8(%arg0: i32) -> (i32, i32) {
    %c0_i32 = arith.constant 0 : i32
    %c0_i32_0 = arith.constant 0 : i32
    %c0_i32_1 = arith.constant 0 : i32
    return %c0_i32, %c0_i32_0 : i32, i32
  }
  func.func @transform_9(%arg0: i32) -> (i32, i32) {
    %c0_i32 = arith.constant 0 : i32
    %c0_i32_0 = arith.constant 0 : i32
    return %c0_i32, %arg0 : i32, i32
  }
}

</mosaic_0001>

<llo_original>
// kernel: tpu_custom_call.1
$region0: #{tpu_custom_call.1}
  #allocation0 [shape = 'u32[]', space=smem, size = 0x4, offset = 0x4, fixed_abs, tag = 'smem constant byte address 0x4 - core index']
  #allocation1 [shape = 'u32[72,128]{1,0:T(1,128)}', space=vmem, size = 0x9000, scoped, tag = 'internal scratch']
  %s0 = inlined_call_operand.vmem [shape: f32[16,128], index: 0, kind: input, shape index: {}]
  %s1 = inlined_call_operand.vmem [shape: f32[32,16], index: 1, kind: input, shape index: {}]
  %s2 = inlined_call_operand.vmem [shape: f32[32,1], index: 2, kind: input, shape index: {}]
  %s3 = inlined_call_operand.vmem [shape: f32[32,32], index: 3, kind: input, shape index: {}]
  %s4 = inlined_call_operand.vmem [shape: f32[32,1], index: 4, kind: input, shape index: {}]
  %s5 = inlined_call_operand.vmem [shape: f32[16,32], index: 5, kind: input, shape index: {}]
  %s6 = inlined_call_operand.vmem [shape: f32[16,1], index: 6, kind: input, shape index: {}]
  %s7 = inlined_call_operand.vmem [shape: f32[4,16], index: 7, kind: input, shape index: {}]
  %s8 = inlined_call_operand.vmem [shape: f32[4,1], index: 8, kind: input, shape index: {}]
  %s9 = inlined_call_operand.hbm [shape: f32[4,128], index: 9, kind: output, shape index: {}]
  %s10 = sld [smem:[#allocation0]]
  $region46: #{tpu_custom_call.1} parent=0
    _
  %s12 = ssub.s32 1, %s10
  %s13 = scalar_select 0, %s12, %s10
  $region1: #{tpu_custom_call.1} parent=0
    #allocation2 [shape = 'u8[2048]{0}', space=vmem, size = 0x800, scoped, tag = 'output window, operand 0, single buffered']
    #allocation3 [shape = 's32[1]{0}', space=sflag, size = 0x4, scoped, tag = 'scoped memory for tpu_custom_call.1']
    %14 = vsyncpa [#allocation3], 0
    // Predicated region
    $region2: #{tpu_custom_call.1} parent=1 // pred_check
      _
    $region3: #{tpu_custom_call.1} parent=1 // pred_check_branch
      %16 = sbr.rel (0) target = $region5
    $region4: #{tpu_custom_call.1} parent=1 // pred_region
      _
    $region5: #{tpu_custom_call.1} parent=1 // pred_fallthru
      _
    // Predicated region
    $region6: #{tpu_custom_call.1} parent=1 // pred_check
      _
    $region7: #{tpu_custom_call.1} parent=1 // pred_check_branch
      %18 = sbr.rel (0) target = $region9
    $region8: #{tpu_custom_call.1} parent=1 // pred_region
      _
    $region9: #{tpu_custom_call.1} parent=1 // pred_fallthru
      _
    // Predicated region
    $region10: #{tpu_custom_call.1} parent=1 // pred_check
      _
    $region11: #{tpu_custom_call.1} parent=1 // pred_check_branch
      %20 = sbr.rel (0) target = $region13
    $region12: #{tpu_custom_call.1} parent=1 // pred_region
      _
    $region13: #{tpu_custom_call.1} parent=1 // pred_fallthru
      _
    // Predicated region
    $region14: #{tpu_custom_call.1} parent=1 // pred_check
      _
    $region15: #{tpu_custom_call.1} parent=1 // pred_check_branch
      %22 = sbr.rel (0) target = $region17
    $region16: #{tpu_custom_call.1} parent=1 // pred_region
      _
    $region17: #{tpu_custom_call.1} parent=1 // pred_fallthru
      _
    // Predicated region
    $region18: #{tpu_custom_call.1} parent=1 // pred_check
      _
    $region19: #{tpu_custom_call.1} parent=1 // pred_check_branch
      %24 = sbr.rel (0) target = $region21
    $region20: #{tpu_custom_call.1} parent=1 // pred_region
      _
    $region21: #{tpu_custom_call.1} parent=1 // pred_fallthru
      _
    // Predicated region
    $region22: #{tpu_custom_call.1} parent=1 // pred_check
      _
    $region23: #{tpu_custom_call.1} parent=1 // pred_check_branch
      %26 = sbr.rel (0) target = $region25
    $region24: #{tpu_custom_call.1} parent=1 // pred_region
      _
    $region25: #{tpu_custom_call.1} parent=1 // pred_fallthru
      _
    // Predicated region
    $region26: #{tpu_custom_call.1} parent=1 // pred_check
      _
    $region27: #{tpu_custom_call.1} parent=1 // pred_check_branch
      %28 = sbr.rel (0) target = $region29
    $region28: #{tpu_custom_call.1} parent=1 // pred_region
      _
    $region29: #{tpu_custom_call.1} parent=1 // pred_fallthru
      _
    // Predicated region
    $region30: #{tpu_custom_call.1} parent=1 // pred_check
      _
    $region31: #{tpu_custom_call.1} parent=1 // pred_check_branch
      %30 = sbr.rel (0) target = $region33
    $region32: #{tpu_custom_call.1} parent=1 // pred_region
      _
    $region33: #{tpu_custom_call.1} parent=1 // pred_fallthru
      _
    // Predicated region
    $region34: #{tpu_custom_call.1} parent=1 // pred_check
      _
    $region35: #{tpu_custom_call.1} parent=1 // pred_check_branch
      %32 = sbr.rel (0) target = $region37
    $region36: #{tpu_custom_call.1} parent=1 // pred_region
      _
    $region37: #{tpu_custom_call.1} parent=1 // pred_fallthru
      _
    %v33 = vld [vmem:[%s1] sm:$0xff]
    %v34 = vld [vmem:[%s1 + $0x8] sm:$0xff]
    %v35 = vld [vmem:[%s1 + $0x10] sm:$0xff]
    %v36 = vld [vmem:[%s1 + $0x18] sm:$0xff]
    %v37 = vld [vmem:[%s0] sm:$0xff]
    %v38 = vld [vmem:[%s0 + $0x8] sm:$0xff]
    %v39 = vld [vmem:[%s2] sm:$0xff]
    %v40 = vld [vmem:[%s2 + $0x8] sm:$0xff]
    %v41 = vld [vmem:[%s2 + $0x10] sm:$0xff]
    %v42 = vld [vmem:[%s2 + $0x18] sm:$0xff]
    %44 = vset.pattern.permute.xlu0 0
    %45 = vperm.xlu0 %44, %v39
    %v46 = vpop.permute.xlu0 %45
    %49 = vset.pattern.permute.xlu0 0
    %50 = vperm.xlu0 %49, %v40
    %v51 = vpop.permute.xlu0 %50
    %54 = vset.pattern.permute.xlu0 0
    %55 = vperm.xlu0 %54, %v41
    %v56 = vpop.permute.xlu0 %55
    %59 = vset.pattern.permute.xlu0 0
    %60 = vperm.xlu0 %59, %v42
    %v61 = vpop.permute.xlu0 %60
    %vm63 = vcmask 130048
    %v65 = vsel %vm63, %v33, 0
    %v68 = vsel %vm63, %v34, 0
    %v71 = vsel %vm63, %v35, 0
    %v74 = vsel %vm63, %v36, 0
    %76 = vmatpush.msra.mxu0 0.0
    %77 = vmatpush.msra.mxu0 0.0
    %78 = vmatpush.msra.mxu0 0.0
    %79 = vmatpush.msra.mxu0 0.0
    %80 = vmatpush.msra.mxu0 0.0
    %81 = vmatpush.msra.mxu0 0.0
    %82 = vmatpush.msra.mxu0 0.0
    %83 = vmatpush.msra.mxu0 0.0
    %84 = vmatpush.msra.mxu0 0.0
    %85 = vmatpush.msra.mxu0 0.0
    %86 = vmatpush.msra.mxu0 0.0
    %87 = vmatpush.msra.mxu0 0.0
    %88 = vmatpush.msra.mxu0 0.0
    %89 = vmatpush.msra.mxu0 0.0
    %90 = vmatpush.msra.mxu0 %v38
    %91 = vmatpush.msra.mxu0 %v37
    %92 = vmatmul.f32.gmra.mxu0 %v65
    %v93 = vpop.f32.mrf.mxu0
    %v94 = vadd.f32 %v46, %v93
    %95 = vmatmul.f32.gmra.mxu0 %v68
    %v96 = vpop.f32.mrf.mxu0
    %v97 = vadd.f32 %v51, %v96
    %98 = vmatmul.f32.gmra.mxu0 %v71
    %v99 = vpop.f32.mrf.mxu0
    %v100 = vadd.f32 %v56, %v99
    %101 = vmatmul.f32.gmra.mxu0 %v74
    %v102 = vpop.f32.mrf.mxu0
    %v103 = vadd.f32 %v61, %v102
    %104 = vdwg.mxu0
    %v105 = vmax.f32 %v94, 0.0
    %v106 = vmax.f32 %v97, 0.0
    %v107 = vmax.f32 %v100, 0.0
    %v108 = vmax.f32 %v103, 0.0
    %v109 = vld [vmem:[%s3] sm:$0xff]
    %v110 = vld [vmem:[%s3 + $0x8] sm:$0xff]
    %v111 = vld [vmem:[%s3 + $0x10] sm:$0xff]
    %v112 = vld [vmem:[%s3 + $0x18] sm:$0xff]
    %v113 = vld [vmem:[%s4] sm:$0xff]
    %v114 = vld [vmem:[%s4 + $0x8] sm:$0xff]
    %v115 = vld [vmem:[%s4 + $0x10] sm:$0xff]
    %v116 = vld [vmem:[%s4 + $0x18] sm:$0xff]
    %118 = vset.pattern.permute.xlu0 0
    %119 = vperm.xlu0 %118, %v113
    %v120 = vpop.permute.xlu0 %119
    %123 = vset.pattern.permute.xlu0 0
    %124 = vperm.xlu0 %123, %v114
    %v125 = vpop.permute.xlu0 %124
    %128 = vset.pattern.permute.xlu0 0
    %129 = vperm.xlu0 %128, %v115
    %v130 = vpop.permute.xlu0 %129
    %133 = vset.pattern.permute.xlu0 0
    %134 = vperm.xlu0 %133, %v116
    %v135 = vpop.permute.xlu0 %134
    %vm137 = vcmask 261120
    %v139 = vsel %vm137, %v109, 0
    %v142 = vsel %vm137, %v110, 0
    %v145 = vsel %vm137, %v111, 0
    %v148 = vsel %vm137, %v112, 0
    %150 = vmatpush.msra.mxu0 0.0
    %151 = vmatpush.msra.mxu0 0.0
    %152 = vmatpush.msra.mxu0 0.0
    %153 = vmatpush.msra.mxu0 0.0
    %154 = vmatpush.msra.mxu0 0.0
    %155 = vmatpush.msra.mxu0 0.0
    %156 = vmatpush.msra.mxu0 0.0
    %157 = vmatpush.msra.mxu0 0.0
    %158 = vmatpush.msra.mxu0 0.0
    %159 = vmatpush.msra.mxu0 0.0
    %160 = vmatpush.msra.mxu0 0.0
    %161 = vmatpush.msra.mxu0 0.0
    %162 = vmatpush.msra.mxu0 %v108
    %163 = vmatpush.msra.mxu0 %v107
    %164 = vmatpush.msra.mxu0 %v106
    %165 = vmatpush.msra.mxu0 %v105
    %166 = vmatmul.f32.gmra.mxu0 %v139
    %v167 = vpop.f32.mrf.mxu0
    %v168 = vadd.f32 %v120, %v167
    %169 = vmatmul.f32.gmra.mxu0 %v142
    %v170 = vpop.f32.mrf.mxu0
    %v171 = vadd.f32 %v125, %v170
    %172 = vmatmul.f32.gmra.mxu0 %v145
    %v173 = vpop.f32.mrf.mxu0
    %v174 = vadd.f32 %v130, %v173
    %175 = vmatmul.f32.gmra.mxu0 %v148
    %v176 = vpop.f32.mrf.mxu0
    %v177 = vadd.f32 %v135, %v176
    %178 = vdwg.mxu0
    %v179 = vmax.f32 %v168, 0.0
    %v180 = vmax.f32 %v171, 0.0
    %v181 = vmax.f32 %v174, 0.0
    %v182 = vmax.f32 %v177, 0.0
    %v183 = vld [vmem:[%s5] sm:$0xff]
    %v184 = vld [vmem:[%s5 + $0x8] sm:$0xff]
    %v185 = vld [vmem:[%s6] sm:$0xff]
    %v186 = vld [vmem:[%s6 + $0x8] sm:$0xff]
    %188 = vset.pattern.permute.xlu0 0
    %189 = vperm.xlu0 %188, %v185
    %v190 = vpop.permute.xlu0 %189
    %193 = vset.pattern.permute.xlu0 0
    %194 = vperm.xlu0 %193, %v186
    %v195 = vpop.permute.xlu0 %194
    %v198 = vsel %vm137, %v183, 0
    %v201 = vsel %vm137, %v184, 0
    %203 = vmatpush.msra.mxu0 0.0
    %204 = vmatpush.msra.mxu0 0.0
    %205 = vmatpush.msra.mxu0 0.0
    %206 = vmatpush.msra.mxu0 0.0
    %207 = vmatpush.msra.mxu0 0.0
    %208 = vmatpush.msra.mxu0 0.0
    %209 = vmatpush.msra.mxu0 0.0
    %210 = vmatpush.msra.mxu0 0.0
    %211 = vmatpush.msra.mxu0 0.0
    %212 = vmatpush.msra.mxu0 0.0
    %213 = vmatpush.msra.mxu0 0.0
    %214 = vmatpush.msra.mxu0 0.0
    %215 = vmatpush.msra.mxu0 %v182
    %216 = vmatpush.msra.mxu0 %v181
    %217 = vmatpush.msra.mxu0 %v180
    %218 = vmatpush.msra.mxu0 %v179
    %219 = vmatmul.f32.gmra.mxu0 %v198
    %v220 = vpop.f32.mrf.mxu0
    %v221 = vadd.f32 %v190, %v220
    %222 = vmatmul.f32.gmra.mxu0 %v201
    %v223 = vpop.f32.mrf.mxu0
    %v224 = vadd.f32 %v195, %v223
    %225 = vdwg.mxu0
    %v226 = vmax.f32 %v221, 0.0
    %v227 = vmax.f32 %v224, 0.0
    %v228 = vld [vmem:[%s7] sm:$0xf]
    %v229 = vld [vmem:[%s8] sm:$0xf]
    %231 = vset.pattern.permute.xlu0 0
    %232 = vperm.xlu0 %231, %v229
    %v233 = vpop.permute.xlu0 %232
    %v236 = vsel %vm63, %v228, 0
    %238 = vmatpush.msra.mxu0 0.0
    %239 = vmatpush.msra.mxu0 0.0
    %240 = vmatpush.msra.mxu0 0.0
    %241 = vmatpush.msra.mxu0 0.0
    %242 = vmatpush.msra.mxu0 0.0
    %243 = vmatpush.msra.mxu0 0.0
    %244 = vmatpush.msra.mxu0 0.0
    %245 = vmatpush.msra.mxu0 0.0
    %246 = vmatpush.msra.mxu0 0.0
    %247 = vmatpush.msra.mxu0 0.0
    %248 = vmatpush.msra.mxu0 0.0
    %249 = vmatpush.msra.mxu0 0.0
    %250 = vmatpush.msra.mxu0 0.0
    %251 = vmatpush.msra.mxu0 0.0
    %252 = vmatpush.msra.mxu0 %v227
    %253 = vmatpush.msra.mxu0 %v226
    %254 = vmatmul.f32.gmra.mxu0 %v236
    %v255 = vpop.f32.mrf.mxu0
    %v256 = vadd.f32 %v233, %v255
    %257 = vdwg.mxu0
    %258 = vst [vmem:[#allocation2] sm:$0xf] %v256
    // Predicated region
    $region38: #{tpu_custom_call.1} parent=1 // pred_check
      _
    $region39: #{tpu_custom_call.1} parent=1 // pred_check_branch
      %260 = sbr.rel (0) target = $region41
    $region40: #{tpu_custom_call.1} parent=1 // pred_region
      %262 = vsyncadd [#allocation3], 0
      %s264 = sshll.u32 [#allocation2], 4
      %s265 = int_to_ptr.vmem [resolvable:$true] %s264
      %s266 = sshll.u32 %s9, 4
      %s267 = int_to_ptr.hbm [resolvable:$true] %s266
      %269 = dma.vmem_to_hbm [thread:$0]  %s265, 64, %s267, [#allocation3]
    $region41: #{tpu_custom_call.1} parent=1 // pred_fallthru
      _
    // Predicated region
    $region42: #{tpu_custom_call.1} parent=1 // pred_check
      _
    $region43: #{tpu_custom_call.1} parent=1 // pred_check_branch
      %271 = sbr.rel (0) target = $region45
    $region44: #{tpu_custom_call.1} parent=1 // pred_region
      %273 = dma.done [#allocation3], 64
    $region45: #{tpu_custom_call.1} parent=1 // pred_fallthru
      _
    %274 = vsyncpa [#allocation3], 1

</llo_original>
